<compile_context>
chip_gen: v5e
topology: v5e:2x2
jax: 0.10.0
libtpu: 0.0.40
codegen_flags: <defaults>
</compile_context>

<pallas_src>
import functools

import jax
import jax.numpy as jnp
from jax.experimental import pallas as pl
from jax.experimental.pallas import tpu as pltpu


def _mc_dropout_kernel(x_ref,            # VMEM (B, D_in)
                       w1_ref, b1_ref,   # VMEM (D_in, H), (1, H)
                       w2_ref, b2_ref,   # VMEM (H, H),    (1, H)
                       w3_ref, b3_ref,   # VMEM (H, D_out),(1, D_out)
                       m1_ref,           # VMEM (S*B, H) pre-scaled keep mask, layer 1
                       m2_ref,           # VMEM (S*B, H) pre-scaled keep mask, layer 2
                       o_ref,            # VMEM (S*B, D_out)
                       *, n_samples):
    # fc1 + ReLU: deterministic across MC samples -> computed ONCE for the
    # real batch, then replicated along the sublane (row) axis.  batch is a
    # full 8-row sublane tile, so the concat is layout-clean.
    h1 = jnp.dot(x_ref[...], w1_ref[...], preferred_element_type=jnp.float32)
    h1 = jnp.maximum(h1 + b1_ref[...], 0.0)                    # (B, H)
    h1_all = jnp.concatenate([h1] * n_samples, axis=0)         # (S*B, H)

    # dropout 1 (mask already carries the 1/(1-p) inverted-dropout scale)
    a1 = h1_all * m1_ref[...]

    # fc2 + ReLU + dropout 2 — one MXU pass over all samples at once.
    h2 = jnp.dot(a1, w2_ref[...], preferred_element_type=jnp.float32)
    h2 = jnp.maximum(h2 + b2_ref[...], 0.0)
    a2 = h2 * m2_ref[...]

    # fc3 (no activation)
    out = jnp.dot(a2, w3_ref[...], preferred_element_type=jnp.float32) + b3_ref[...]
    o_ref[...] = out.astype(o_ref.dtype)


def mc_dropout_samples(x, params, mask1, mask2, *, n_samples):
    """All n_samples stochastic forward passes in ONE fused Pallas kernel.

    Returns predictions of shape (n_samples, batch, out_dim).
    At these shapes everything stays fully VMEM-resident with no grid.
    # TODO(synk): for large hidden_dim (~>2k on v7x) switch to a K-tiled grid
    # with a VMEM accumulator (or bf16 weights) instead of the all-resident design.
    """
    w1, b1, w2, b2, w3, b3 = params
    batch = x.shape[0]
    out_dim = w3.shape[1]

    kernel = functools.partial(_mc_dropout_kernel, n_samples=n_samples)
    vmem = pl.BlockSpec(memory_space=pltpu.MemorySpace.VMEM)

    out = pl.pallas_call(
        kernel,
        out_shape=jax.ShapeDtypeStruct((n_samples * batch, out_dim), jnp.float32),
        in_specs=[vmem] * 9,
        out_specs=vmem,
    )(x, w1, b1, w2, b2, w3, b3, mask1, mask2)
    return out.reshape(n_samples, batch, out_dim)


@functools.partial(jax.jit, static_argnames=("n_samples", "dropout_rate"))
def predict_with_uncertainty(x, params, key, *, n_samples=5, dropout_rate=0.1):
    """MC-Dropout predictive mean / std (torch.std default => unbiased, ddof=1)."""
    batch = x.shape[0]
    hidden = params[0].shape[1]
    keep_prob = 1.0 - dropout_rate
    inv_keep = 1.0 / keep_prob

    k1, k2 = jax.random.split(key)
    shape = (n_samples * batch, hidden)
    mask1 = jax.random.bernoulli(k1, keep_prob, shape).astype(jnp.float32) * inv_keep
    mask2 = jax.random.bernoulli(k2, keep_prob, shape).astype(jnp.float32) * inv_keep

    preds = mc_dropout_samples(x, params, mask1, mask2, n_samples=n_samples)
    mean = preds.mean(axis=0)
    std = preds.std(axis=0, ddof=1)
    return mean, std, preds


def _reference_samples(x, params, mask1, mask2, n_samples):
    """Pure-JAX reference with identical masks (correctness oracle)."""
    w1, b1, w2, b2, w3, b3 = params
    hi = jax.lax.Precision.HIGHEST
    h1 = jnp.maximum(jnp.dot(x, w1, precision=hi) + b1, 0.0)
    h1_all = jnp.concatenate([h1] * n_samples, axis=0)
    a1 = h1_all * mask1
    h2 = jnp.maximum(jnp.dot(a1, w2, precision=hi) + b2, 0.0)
    a2 = h2 * mask2
    out = jnp.dot(a2, w3, precision=hi) + b3
    return out.reshape(n_samples, x.shape[0], w3.shape[1])


def init_params(key, input_dim, hidden_dim, output_dim):
    """Mimics nn.Linear's U(-1/sqrt(fan_in), 1/sqrt(fan_in)) init.
    Weights stored as [in, out]; biases as [1, out] for clean VMEM layout."""
    def linear(k, fan_in, fan_out):
        kw, kb = jax.random.split(k)
        bound = 1.0 / jnp.sqrt(fan_in)
        w = jax.random.uniform(kw, (fan_in, fan_out), jnp.float32, -bound, bound)
        b = jax.random.uniform(kb, (1, fan_out), jnp.float32, -bound, bound)
        return w, b

    k1, k2, k3 = jax.random.split(key, 3)
    w1, b1 = linear(k1, input_dim, hidden_dim)
    w2, b2 = linear(k2, hidden_dim, hidden_dim)
    w3, b3 = linear(k3, hidden_dim, output_dim)
    return (w1, b1, w2, b2, w3, b3)


if __name__ == "__main__":
    # Small shapes consistent with the module (small input_dim, hidden MLP, scalar output).
    batch, input_dim, hidden_dim, output_dim = 8, 4, 32, 1
    dropout_rate = 0.1
    n_samples = 5

    root = jax.random.PRNGKey(0)
    kx, kp, kd = jax.random.split(root, 3)
    x = jax.random.normal(kx, (batch, input_dim), dtype=jnp.float32)
    params = init_params(kp, input_dim, hidden_dim, output_dim)

    # --- Run the fused kernel once and check against a pure-JAX reference
    #     using identical dropout masks.
    keep_prob = 1.0 - dropout_rate
    km1, km2 = jax.random.split(kd)
    mshape = (n_samples * batch, hidden_dim)
    m1 = jax.random.bernoulli(km1, keep_prob, mshape).astype(jnp.float32) / keep_prob
    m2 = jax.random.bernoulli(km2, keep_prob, mshape).astype(jnp.float32) / keep_prob

    preds_kernel = jax.block_until_ready(
        mc_dropout_samples(x, params, m1, m2, n_samples=n_samples))
    preds_ref = _reference_samples(x, params, m1, m2, n_samples)
    assert preds_kernel.shape == (n_samples, batch, output_dim)
    assert jnp.allclose(preds_kernel, preds_ref, rtol=1e-4, atol=1e-4)

    # --- Full MC-dropout uncertainty path: one jitted dispatch, one kernel launch.
    mean, std, preds = predict_with_uncertainty(
        x, params, kd, n_samples=n_samples, dropout_rate=dropout_rate)
    jax.block_until_ready((mean, std, preds))
    assert mean.shape == (batch, output_dim)
    assert std.shape == (batch, output_dim)
    assert preds.shape == (n_samples, batch, output_dim)
    assert bool(jnp.all(jnp.isfinite(mean))) and bool(jnp.all(jnp.isfinite(std)))

    print("KERNEL_OK")
</pallas_src>

<mosaic_0001>
module attributes {stable_mosaic.version = 11 : i64} {
  func.func @_mc_dropout_kernel(%arg0: memref<8x4xf32, #tpu.memory_space<vmem>>, %arg1: memref<4x32xf32, #tpu.memory_space<vmem>>, %arg2: memref<1x32xf32, #tpu.memory_space<vmem>>, %arg3: memref<32x32xf32, #tpu.memory_space<vmem>>, %arg4: memref<1x32xf32, #tpu.memory_space<vmem>>, %arg5: memref<32x1xf32, #tpu.memory_space<vmem>>, %arg6: memref<1x1xf32, #tpu.memory_space<vmem>>, %arg7: memref<40x32xf32, #tpu.memory_space<vmem>>, %arg8: memref<40x32xf32, #tpu.memory_space<vmem>>, %arg9: memref<40x1xf32, #tpu.memory_space<vmem>>) attributes {dimension_semantics = [], scalar_prefetch = 0 : i64, scratch_operands = 0 : i64, tpu.core_type = #tpu.core_type<tc>} {
    %c0 = arith.constant 0 : index
    %c0_0 = arith.constant 0 : index
    %0 = vector.load %arg0[%c0, %c0_0] : memref<8x4xf32, #tpu.memory_space<vmem>>, vector<8x4xf32>
    %c0_1 = arith.constant 0 : index
    %c0_2 = arith.constant 0 : index
    %1 = vector.load %arg1[%c0_1, %c0_2] : memref<4x32xf32, #tpu.memory_space<vmem>>, vector<4x32xf32>
    %cst = arith.constant dense<0.000000e+00> : vector<8x32xf32>
    %2 = tpu.matmul %0, %1, %cst {dimension_numbers = #tpu.dot_dimension_numbers<[1], [0], [0], [1], [0, 0, 1, 1], [], []>} : vector<8x4xf32>, vector<4x32xf32>, vector<8x32xf32> -> vector<8x32xf32>
    %c0_3 = arith.constant 0 : index
    %c0_4 = arith.constant 0 : index
    %3 = vector.load %arg2[%c0_3, %c0_4] : memref<1x32xf32, #tpu.memory_space<vmem>>, vector<1x32xf32>
    %4 = vector.broadcast %3 : vector<1x32xf32> to vector<8x32xf32>
    %5 = arith.addf %2, %4 : vector<8x32xf32>
    %cst_5 = arith.constant 0.000000e+00 : f32
    %6 = vector.broadcast %cst_5 : f32 to vector<8x32xf32>
    %7 = arith.maximumf %5, %6 : vector<8x32xf32>
    %8 = tpu.concatenate %7, %7, %7, %7, %7 in 0 : vector<8x32xf32>, vector<8x32xf32>, vector<8x32xf32>, vector<8x32xf32>, vector<8x32xf32> -> vector<40x32xf32>
    %c0_6 = arith.constant 0 : index
    %c0_7 = arith.constant 0 : index
    %9 = vector.load %arg7[%c0_6, %c0_7] : memref<40x32xf32, #tpu.memory_space<vmem>>, vector<40x32xf32>
    %10 = arith.mulf %8, %9 : vector<40x32xf32>
    %c0_8 = arith.constant 0 : index
    %c0_9 = arith.constant 0 : index
    %11 = vector.load %arg3[%c0_8, %c0_9] : memref<32x32xf32, #tpu.memory_space<vmem>>, vector<32x32xf32>
    %cst_10 = arith.constant dense<0.000000e+00> : vector<40x32xf32>
    %12 = tpu.matmul %10, %11, %cst_10 {dimension_numbers = #tpu.dot_dimension_numbers<[1], [0], [0], [1], [0, 0, 1, 1], [], []>} : vector<40x32xf32>, vector<32x32xf32>, vector<40x32xf32> -> vector<40x32xf32>
    %c0_11 = arith.constant 0 : index
    %c0_12 = arith.constant 0 : index
    %13 = vector.load %arg4[%c0_11, %c0_12] : memref<1x32xf32, #tpu.memory_space<vmem>>, vector<1x32xf32>
    %14 = vector.broadcast %13 : vector<1x32xf32> to vector<40x32xf32>
    %15 = arith.addf %12, %14 : vector<40x32xf32>
    %cst_13 = arith.constant 0.000000e+00 : f32
    %16 = vector.broadcast %cst_13 : f32 to vector<40x32xf32>
    %17 = arith.maximumf %15, %16 : vector<40x32xf32>
    %c0_14 = arith.constant 0 : index
    %c0_15 = arith.constant 0 : index
    %18 = vector.load %arg8[%c0_14, %c0_15] : memref<40x32xf32, #tpu.memory_space<vmem>>, vector<40x32xf32>
    %19 = arith.mulf %17, %18 : vector<40x32xf32>
    %c0_16 = arith.constant 0 : index
    %c0_17 = arith.constant 0 : index
    %20 = vector.load %arg5[%c0_16, %c0_17] : memref<32x1xf32, #tpu.memory_space<vmem>>, vector<32x1xf32>
    %cst_18 = arith.constant dense<0.000000e+00> : vector<40x1xf32>
    %21 = tpu.matmul %19, %20, %cst_18 {dimension_numbers = #tpu.dot_dimension_numbers<[1], [0], [0], [1], [0, 0, 1, 1], [], []>} : vector<40x32xf32>, vector<32x1xf32>, vector<40x1xf32> -> vector<40x1xf32>
    %c0_19 = arith.constant 0 : index
    %c0_20 = arith.constant 0 : index
    %22 = vector.load %arg6[%c0_19, %c0_20] : memref<1x1xf32, #tpu.memory_space<vmem>>, vector<1x1xf32>
    %23 = vector.broadcast %22 : vector<1x1xf32> to vector<40x1xf32>
    %24 = arith.addf %21, %23 : vector<40x1xf32>
    %c0_21 = arith.constant 0 : index
    %c0_22 = arith.constant 0 : index
    %25 = vector.load %arg9[%c0_21, %c0_22] : memref<40x1xf32, #tpu.memory_space<vmem>>, vector<40x1xf32>
    tpu.vector_store %arg9[%c0_21, %c0_22], %24 {strides = array<i32>} : memref<40x1xf32, #tpu.memory_space<vmem>>, vector<40x1xf32>,
    return
  }
}

</mosaic_0001>

<llo_original>
// kernel: tpu_custom_call.1
$region0: #{tpu_custom_call.1}
  #allocation0 [shape = 'u32[]', space=smem, size = 0x4, offset = 0x4, fixed_abs, tag = 'smem constant byte address 0x4 - core index']
  #allocation1 [shape = 'u32[72,128]{1,0:T(1,128)}', space=vmem, size = 0x9000, scoped, tag = 'internal scratch']
  #allocation2 [shape = 'f32[1,1]{1,0:T(1,128)S(1)}', space=vmem, size = 0x200, scoped, tag = 'scoped memory for tpu_custom_call.1']
  %s0 = inlined_call_operand.vmem [shape: f32[8,4], index: 0, kind: input, shape index: {}]
  %s1 = inlined_call_operand.vmem [shape: f32[4,32], index: 1, kind: input, shape index: {}]
  %s2 = inlined_call_operand.vmem [shape: f32[1,32], index: 2, kind: input, shape index: {}]
  %s3 = inlined_call_operand.vmem [shape: f32[32,32], index: 3, kind: input, shape index: {}]
  %s4 = inlined_call_operand.vmem [shape: f32[1,32], index: 4, kind: input, shape index: {}]
  %s5 = inlined_call_operand.vmem [shape: f32[32,1], index: 5, kind: input, shape index: {}]
  %s6 = inlined_call_operand.<no memory space> [shape: f32[1,1], index: 6, kind: input, shape index: {}]
  %s7 = inlined_call_operand.vmem [shape: f32[40,32], index: 7, kind: input, shape index: {}]
  %s8 = inlined_call_operand.vmem [shape: f32[40,32], index: 8, kind: input, shape index: {}]
  %s9 = inlined_call_operand.vmem [shape: f32[40,1], index: 9, kind: output, shape index: {}]
  %s10 = sld [smem:[#allocation0]]
  $region46: #{tpu_custom_call.1} parent=0
    _
  %s12 = ssub.s32 1, %s10
  %s13 = scalar_select 0, %s12, %s10
  %v14 = vstv %s6
  %15 = vst [vmem:[#allocation2] sm:$0x1] %v14
  // Predicated region
  $region2: #{tpu_custom_call.1} parent=0 // pred_check
    _
  $region3: #{tpu_custom_call.1} parent=0 // pred_check_branch
    %17 = sbr.rel (0) target = $region5
  $region4: #{tpu_custom_call.1} parent=0 // pred_region
    _
  $region5: #{tpu_custom_call.1} parent=0 // pred_fallthru
    _
  // Predicated region
  $region6: #{tpu_custom_call.1} parent=0 // pred_check
    _
  $region7: #{tpu_custom_call.1} parent=0 // pred_check_branch
    %19 = sbr.rel (0) target = $region9
  $region8: #{tpu_custom_call.1} parent=0 // pred_region
    _
  $region9: #{tpu_custom_call.1} parent=0 // pred_fallthru
    _
  // Predicated region
  $region10: #{tpu_custom_call.1} parent=0 // pred_check
    _
  $region11: #{tpu_custom_call.1} parent=0 // pred_check_branch
    %21 = sbr.rel (0) target = $region13
  $region12: #{tpu_custom_call.1} parent=0 // pred_region
    _
  $region13: #{tpu_custom_call.1} parent=0 // pred_fallthru
    _
  // Predicated region
  $region14: #{tpu_custom_call.1} parent=0 // pred_check
    _
  $region15: #{tpu_custom_call.1} parent=0 // pred_check_branch
    %23 = sbr.rel (0) target = $region17
  $region16: #{tpu_custom_call.1} parent=0 // pred_region
    _
  $region17: #{tpu_custom_call.1} parent=0 // pred_fallthru
    _
  // Predicated region
  $region18: #{tpu_custom_call.1} parent=0 // pred_check
    _
  $region19: #{tpu_custom_call.1} parent=0 // pred_check_branch
    %25 = sbr.rel (0) target = $region21
  $region20: #{tpu_custom_call.1} parent=0 // pred_region
    _
  $region21: #{tpu_custom_call.1} parent=0 // pred_fallthru
    _
  // Predicated region
  $region22: #{tpu_custom_call.1} parent=0 // pred_check
    _
  $region23: #{tpu_custom_call.1} parent=0 // pred_check_branch
    %27 = sbr.rel (0) target = $region25
  $region24: #{tpu_custom_call.1} parent=0 // pred_region
    _
  $region25: #{tpu_custom_call.1} parent=0 // pred_fallthru
    _
  // Predicated region
  $region26: #{tpu_custom_call.1} parent=0 // pred_check
    _
  $region27: #{tpu_custom_call.1} parent=0 // pred_check_branch
    %29 = sbr.rel (0) target = $region29
  $region28: #{tpu_custom_call.1} parent=0 // pred_region
    _
  $region29: #{tpu_custom_call.1} parent=0 // pred_fallthru
    _
  // Predicated region
  $region30: #{tpu_custom_call.1} parent=0 // pred_check
    _
  $region31: #{tpu_custom_call.1} parent=0 // pred_check_branch
    %31 = sbr.rel (0) target = $region33
  $region32: #{tpu_custom_call.1} parent=0 // pred_region
    _
  $region33: #{tpu_custom_call.1} parent=0 // pred_fallthru
    _
  // Predicated region
  $region34: #{tpu_custom_call.1} parent=0 // pred_check
    _
  $region35: #{tpu_custom_call.1} parent=0 // pred_check_branch
    %33 = sbr.rel (0) target = $region37
  $region36: #{tpu_custom_call.1} parent=0 // pred_region
    _
  $region37: #{tpu_custom_call.1} parent=0 // pred_fallthru
    _
  %v34 = vld [vmem:[%s0] sm:$0xff]
  %v35 = vld [vmem:[%s1] sm:$0xf]
  %v36 = vld [vmem:[%s2] sm:$0x1]
  %v38 = vperm.slane %v36, 0
  %vm40 = vcmask 31744
  %v42 = vsel %vm40, %v34, 0
  %vm44 = vcmask 1043456
  %v46 = vsel %vm44, %v35, 0
  %48 = vmatpush.msra.mxu0 0.0
  %49 = vmatpush.msra.mxu0 0.0
  %50 = vmatpush.msra.mxu0 0.0
  %51 = vmatpush.msra.mxu0 0.0
  %52 = vmatpush.msra.mxu0 0.0
  %53 = vmatpush.msra.mxu0 0.0
  %54 = vmatpush.msra.mxu0 0.0
  %55 = vmatpush.msra.mxu0 0.0
  %56 = vmatpush.msra.mxu0 0.0
  %57 = vmatpush.msra.mxu0 0.0
  %58 = vmatpush.msra.mxu0 0.0
  %59 = vmatpush.msra.mxu0 0.0
  %60 = vmatpush.msra.mxu0 0.0
  %61 = vmatpush.msra.mxu0 0.0
  %62 = vmatpush.msra.mxu0 0.0
  %63 = vmatpush.msra.mxu0 %v46
  %64 = vmatmul.f32.gmra.mxu0 %v42
  %v65 = vpop.f32.mrf.mxu0
  %v66 = vadd.f32 %v38, %v65
  %67 = vdwg.mxu0
  %v68 = vmax.f32 %v66, 0.0
  %v69 = vld [vmem:[%s7] sm:$0xff]
  %v70 = vld [vmem:[%s7 + $0x8] sm:$0xff]
  %v71 = vld [vmem:[%s7 + $0x10] sm:$0xff]
  %v72 = vld [vmem:[%s7 + $0x18] sm:$0xff]
  %v73 = vld [vmem:[%s7 + $0x20] sm:$0xff]
  %v74 = vmul.f32 %v68, %v69
  %v75 = vmul.f32 %v68, %v70
  %v76 = vmul.f32 %v68, %v71
  %v77 = vmul.f32 %v68, %v72
  %v78 = vmul.f32 %v68, %v73
  %v79 = vld [vmem:[%s3] sm:$0xff]
  %v80 = vld [vmem:[%s3 + $0x8] sm:$0xff]
  %v81 = vld [vmem:[%s3 + $0x10] sm:$0xff]
  %v82 = vld [vmem:[%s3 + $0x18] sm:$0xff]
  %v83 = vld [vmem:[%s4] sm:$0x1]
  %v85 = vperm.slane %v83, 0
  %vm87 = vcmask 261120
  %v89 = vsel %vm87, %v74, 0
  %v92 = vsel %vm87, %v75, 0
  %v95 = vsel %vm87, %v76, 0
  %v98 = vsel %vm87, %v77, 0
  %v101 = vsel %vm87, %v78, 0
  %103 = vmatpush.msra.mxu0 0.0
  %104 = vmatpush.msra.mxu0 0.0
  %105 = vmatpush.msra.mxu0 0.0
  %106 = vmatpush.msra.mxu0 0.0
  %107 = vmatpush.msra.mxu0 0.0
  %108 = vmatpush.msra.mxu0 0.0
  %109 = vmatpush.msra.mxu0 0.0
  %110 = vmatpush.msra.mxu0 0.0
  %111 = vmatpush.msra.mxu0 0.0
  %112 = vmatpush.msra.mxu0 0.0
  %113 = vmatpush.msra.mxu0 0.0
  %114 = vmatpush.msra.mxu0 0.0
  %115 = vmatpush.msra.mxu0 %v82
  %116 = vmatpush.msra.mxu0 %v81
  %117 = vmatpush.msra.mxu0 %v80
  %118 = vmatpush.msra.mxu0 %v79
  %119 = vmatmul.f32.gmra.mxu0 %v89
  %v120 = vpop.f32.mrf.mxu0
  %v121 = vadd.f32 %v85, %v120
  %122 = vmatmul.f32.gmra.mxu0 %v92
  %v123 = vpop.f32.mrf.mxu0
  %v124 = vadd.f32 %v85, %v123
  %125 = vmatmul.f32.gmra.mxu0 %v95
  %v126 = vpop.f32.mrf.mxu0
  %v127 = vadd.f32 %v85, %v126
  %128 = vmatmul.f32.gmra.mxu0 %v98
  %v129 = vpop.f32.mrf.mxu0
  %v130 = vadd.f32 %v85, %v129
  %131 = vmatmul.f32.gmra.mxu0 %v101
  %v132 = vpop.f32.mrf.mxu0
  %v133 = vadd.f32 %v85, %v132
  %134 = vdwg.mxu0
  %v135 = vmax.f32 %v121, 0.0
  %v136 = vmax.f32 %v124, 0.0
  %v137 = vmax.f32 %v127, 0.0
  %v138 = vmax.f32 %v130, 0.0
  %v139 = vmax.f32 %v133, 0.0
  %v140 = vld [vmem:[%s8] sm:$0xff]
  %v141 = vld [vmem:[%s8 + $0x8] sm:$0xff]
  %v142 = vld [vmem:[%s8 + $0x10] sm:$0xff]
  %v143 = vld [vmem:[%s8 + $0x18] sm:$0xff]
  %v144 = vld [vmem:[%s8 + $0x20] sm:$0xff]
  %v145 = vmul.f32 %v135, %v140
  %v146 = vmul.f32 %v136, %v141
  %v147 = vmul.f32 %v137, %v142
  %v148 = vmul.f32 %v138, %v143
  %v149 = vmul.f32 %v139, %v144
  %v150 = vld [vmem:[%s5] sm:$0xff]
  %v151 = vld [vmem:[%s5 + $0x8] sm:$0xff]
  %v152 = vld [vmem:[%s5 + $0x10] sm:$0xff]
  %v153 = vld [vmem:[%s5 + $0x18] sm:$0xff]
  %v154 = vld [vmem:[#allocation2] sm:$0x1]
  %v156 = vperm.slane %v154, 0
  %v159 = vsel %vm87, %v145, 0
  %v162 = vsel %vm87, %v146, 0
  %v165 = vsel %vm87, %v147, 0
  %v168 = vsel %vm87, %v148, 0
  %v171 = vsel %vm87, %v149, 0
  %173 = vmatpush.msra.mxu0 0.0
  %174 = vmatpush.msra.mxu0 0.0
  %175 = vmatpush.msra.mxu0 0.0
  %176 = vmatpush.msra.mxu0 0.0
  %177 = vmatpush.msra.mxu0 0.0
  %178 = vmatpush.msra.mxu0 0.0
  %179 = vmatpush.msra.mxu0 0.0
  %180 = vmatpush.msra.mxu0 0.0
  %181 = vmatpush.msra.mxu0 0.0
  %182 = vmatpush.msra.mxu0 0.0
  %183 = vmatpush.msra.mxu0 0.0
  %184 = vmatpush.msra.mxu0 0.0
  %185 = vmatpush.msra.mxu0 %v153
  %186 = vmatpush.msra.mxu0 %v152
  %187 = vmatpush.msra.mxu0 %v151
  %188 = vmatpush.msra.mxu0 %v150
  %189 = vmatmul.f32.gmra.mxu0 %v159
  %v190 = vpop.f32.mrf.mxu0
  %v191 = vadd.f32 %v156, %v190
  %192 = vmatmul.f32.gmra.mxu0 %v162
  %v193 = vpop.f32.mrf.mxu0
  %v194 = vadd.f32 %v156, %v193
  %195 = vmatmul.f32.gmra.mxu0 %v165
  %v196 = vpop.f32.mrf.mxu0
  %v197 = vadd.f32 %v156, %v196
  %198 = vmatmul.f32.gmra.mxu0 %v168
  %v199 = vpop.f32.mrf.mxu0
  %v200 = vadd.f32 %v156, %v199
  %201 = vmatmul.f32.gmra.mxu0 %v171
  %v202 = vpop.f32.mrf.mxu0
  %v203 = vadd.f32 %v156, %v202
  %204 = vdwg.mxu0
  %vm205 = vcmask 7168
  %206 = vst.msk [vmem:[%s9] sm:$0xff] %vm205, %v191
  %207 = vst.msk [vmem:[%s9 + $0x8] sm:$0xff] %vm205, %v194
  %208 = vst.msk [vmem:[%s9 + $0x10] sm:$0xff] %vm205, %v197
  %209 = vst.msk [vmem:[%s9 + $0x18] sm:$0xff] %vm205, %v200
  %210 = vst.msk [vmem:[%s9 + $0x20] sm:$0xff] %vm205, %v203
  // Predicated region
  $region38: #{tpu_custom_call.1} parent=0 // pred_check
    _
  $region39: #{tpu_custom_call.1} parent=0 // pred_check_branch
    %212 = sbr.rel (0) target = $region41
  $region40: #{tpu_custom_call.1} parent=0 // pred_region
    _
  $region41: #{tpu_custom_call.1} parent=0 // pred_fallthru
    _
  // Predicated region
  $region42: #{tpu_custom_call.1} parent=0 // pred_check
    _
  $region43: #{tpu_custom_call.1} parent=0 // pred_check_branch
    %214 = sbr.rel (0) target = $region45
  $region44: #{tpu_custom_call.1} parent=0 // pred_region
    _
  $region45: #{tpu_custom_call.1} parent=0 // pred_fallthru
    _

</llo_original>
